<compile_context>
chip_gen: v7x
topology: tpu7x:2x2x1
jax: 0.10.0
libtpu: 0.0.40
codegen_flags: <defaults>
</compile_context>

<pallas_src>
import functools

import numpy as np
import jax
import jax.numpy as jnp
from jax.experimental import pallas as pl
from jax.experimental.pallas import tpu as pltpu

_LANE = 128


def _round_up(x: int, m: int) -> int:
    return -(-x // m) * m


def _detect_vmem_bytes() -> int:
    """Physical VMEM of the local part (fallback: assume the smallest, 64 MiB)."""
    try:
        info = pltpu.get_tpu_info()
        for attr in ("vmem_capacity_bytes", "vmem_size_bytes", "vmem_bytes"):
            v = getattr(info, attr, None)
            if v:
                return int(v)
    except Exception:
        pass
    return 64 * 1024 * 1024


def _shift_time_clamped(y: jax.Array, c: int, t_idx: jax.Array) -> jax.Array:
    """y: (T, L).  Returns z with z[t, :] = y[clamp(t + c, 0, T-1), :] (static c)."""
    T = y.shape[0]
    if c == 0:
        return y
    rolled = pltpu.roll(y, shift=(-c) % T, axis=0)      # rolled[t] = y[(t + c) % T]
    if c > 0:
        return jnp.where(t_idx >= T - c, y[T - 1:T, :], rolled)   # clamp to last row
    return jnp.where(t_idx < -c, y[0:1, :], rolled)               # clamp to first row


def _delta_kernel(x_ref, o_ref, *, ctx: int, order: int, scale: tuple):
    # x_ref: (T, L) lane-dense input slab; o_ref: (order+1, T, L).
    T, L = x_ref.shape
    o_ref[0] = x_ref[...]                        # segment 0: original features
    prev = x_ref[...].astype(jnp.float32)        # f32 accumulation (v5e-safe)
    t_idx = jax.lax.broadcasted_iota(jnp.int32, (T, L), 0)
    for k in range(order):
        acc = None
        for c in range(1, ctx + 1):
            s = scale[ctx + c]                   # scale[-c] == -scale[c]; scale[0] == 0
            term = s * (_shift_time_clamped(prev, c, t_idx)
                        - _shift_time_clamped(prev, -c, t_idx))
            acc = term if acc is None else acc + term
        o_ref[k + 1] = acc.astype(o_ref.dtype)   # direct segment store, no concat
        prev = acc


def delta_transform(feats: jax.Array,
                    ctx: int = 2,
                    order: int = 2,
                    delta_as_channel: bool = False) -> jax.Array:
    """Pallas equivalent of DeltaTransform.forward."""
    assert ctx >= 1 and order >= 1
    *lead, T, F = feats.shape
    B = int(np.prod(lead)) if lead else 1

    normalizer = sum(i * i for i in range(-ctx, ctx + 1))
    scale = tuple(float(i) / float(normalizer) for i in range(-ctx, ctx + 1))

    # ---- lane-dense packing: (B, T, F) -> (T, B*F) --------------------------
    x = feats.reshape(B, T, F)
    L_total = B * F
    xp = jnp.transpose(x, (1, 0, 2)).reshape(T, L_total)

    # ---- lane-block sizing from a padding-aware VMEM budget -----------------
    itemsize = jnp.dtype(feats.dtype).itemsize
    sub_io = 8 * max(1, 4 // max(itemsize, 1))          # sublane multiple for i/o dtype
    t_pad_io = _round_up(T, sub_io)
    t_pad32 = _round_up(T, 8)
    per_lane = 2 * t_pad_io * itemsize                  # input tile, double-buffered
    per_lane += 2 * (order + 1) * t_pad_io * itemsize   # output tile, double-buffered
    per_lane += (order + 3) * t_pad32 * 4               # live f32 intermediates in-kernel

    vmem_phys = _detect_vmem_bytes()
    if vmem_phys <= 64 * 1024 * 1024:                   # v7x-class: 64 MiB VMEM
        vmem_limit, io_budget = 32 * 1024 * 1024, 24 * 1024 * 1024
    else:                                               # v5e / v6e: 128 MiB VMEM
        vmem_limit, io_budget = 64 * 1024 * 1024, 44 * 1024 * 1024

    max_lanes = max(1, io_budget // per_lane)
    lblk_cap = max(_LANE, (max_lanes // _LANE) * _LANE)
    if L_total >= 2 * _LANE:
        # Keep >=2 grid steps so both v7x TensorCores get work (harmless on 1-TC parts).
        lblk_cap = min(lblk_cap, _round_up(pl.cdiv(L_total, 2), _LANE))
    lblk = L_total if lblk_cap >= L_total else lblk_cap  # full-width or 128-multiple
    grid = (pl.cdiv(L_total, lblk),)                     # last block may be ragged
    # TODO(synk): for extremely long T where a full-T face exceeds the budget,
    # additionally tile T with +-order*ctx halo rows (nested clamp at edges).

    kernel = functools.partial(_delta_kernel, ctx=ctx, order=order, scale=scale)
    op = pl.pallas_call(
        kernel,
        out_shape=jax.ShapeDtypeStruct((order + 1, T, L_total), feats.dtype),
        grid_spec=pl.GridSpec(
            grid=grid,
            in_specs=[pl.BlockSpec((T, lblk), lambda j: (0, j))],
            out_specs=pl.BlockSpec((order + 1, T, lblk), lambda j: (0, 0, j)),
        ),
        compiler_params=pltpu.CompilerParams(
            dimension_semantics=("parallel",),
            vmem_limit_bytes=vmem_limit,
        ),
    )(xp)

    # ---- undo the packing ----------------------------------------------------
    op4 = op.reshape(order + 1, T, *lead, F)            # (order+1, T, *lead, F)
    nlead = len(lead)
    lead_axes = tuple(range(2, 2 + nlead))
    if delta_as_channel:
        # torch.stack(delta, 1): (*lead[:1], order+1, *lead[1:], T, F)
        if nlead:
            perm = (lead_axes[0], 0) + lead_axes[1:] + (1, 2 + nlead)
        else:
            perm = (1, 0, 2)
        return jnp.transpose(op4, perm)
    # torch.cat(delta, -1): (*lead, T, (order+1)*F)
    perm = lead_axes + (1, 0, 2 + nlead)
    return jnp.transpose(op4, perm).reshape(*lead, T, (order + 1) * F)


def _reference_delta(feats, ctx=2, order=2, delta_as_channel=False):
    """Pure-JAX reference matching the PyTorch module (splice with edge clamp)."""
    normalizer = sum(i * i for i in range(-ctx, ctx + 1))
    scale = jnp.arange(-ctx, ctx + 1, dtype=jnp.float32) / normalizer
    T = feats.shape[-2]

    def one_delta(y):
        acc = jnp.zeros_like(y)
        for i, c in enumerate(range(-ctx, ctx + 1)):
            idx = jnp.clip(jnp.arange(T) + c, 0, T - 1)
            acc = acc + scale[i] * jnp.take(y, idx, axis=-2)
        return acc

    delta = [feats]
    for _ in range(order):
        delta.append(one_delta(delta[-1]))
    if delta_as_channel:
        return jnp.stack(delta, 1)
    return jnp.concatenate(delta, -1)


if __name__ == "__main__":
    key = jax.random.PRNGKey(0)
    # N x C x T x F input (small shapes)
    N, C, T, F = 2, 4, 16, 16
    x = jax.random.normal(key, (N, C, T, F), dtype=jnp.float32)

    y = delta_transform(x, ctx=2, order=2, delta_as_channel=False)
    jax.block_until_ready(y)
    ref = _reference_delta(x, ctx=2, order=2, delta_as_channel=False)
    assert y.shape == ref.shape, (y.shape, ref.shape)
    assert jnp.allclose(y, ref, atol=1e-5, rtol=1e-5), "mismatch vs reference (concat)"

    yc = delta_transform(x, ctx=2, order=2, delta_as_channel=True)
    jax.block_until_ready(yc)
    refc = _reference_delta(x, ctx=2, order=2, delta_as_channel=True)
    assert yc.shape == refc.shape, (yc.shape, refc.shape)
    assert jnp.allclose(yc, refc, atol=1e-5, rtol=1e-5), "mismatch vs reference (channel)"

    print("KERNEL_OK")
</pallas_src>

<mosaic_0001>
module attributes {stable_mosaic.version = 11 : i64} {
  func.func @_delta_kernel(%arg0: i32, %arg1: memref<16x128xf32, #tpu.memory_space<vmem>>, %arg2: memref<3x16x128xf32, #tpu.memory_space<vmem>>) attributes {dimension_semantics = [#tpu.dimension_semantics<parallel>], iteration_bounds = array<i64: 1>, scalar_prefetch = 0 : i64, scratch_operands = 0 : i64, tpu.core_type = #tpu.core_type<tc>, window_params = [{transform_indices = @transform_0, window_bounds = array<i64: 16, 128>}, {transform_indices = @transform_1, window_bounds = array<i64: 3, 16, 128>}]} {
    %c0 = arith.constant 0 : index
    %c0_0 = arith.constant 0 : index
    %0 = vector.load %arg1[%c0, %c0_0] : memref<16x128xf32, #tpu.memory_space<vmem>>, vector<16x128xf32>
    %c0_1 = arith.constant 0 : index
    %c0_2 = arith.constant 0 : index
    %c0_3 = arith.constant 0 : index
    %1 = vector.load %arg2[%c0_1, %c0_2, %c0_3] : memref<3x16x128xf32, #tpu.memory_space<vmem>>, vector<1x16x128xf32>
    %2 = vector.shape_cast %1 : vector<1x16x128xf32> to vector<16x128xf32>
    %3 = vector.shape_cast %0 : vector<16x128xf32> to vector<1x16x128xf32>
    tpu.vector_store %arg2[%c0_1, %c0_2, %c0_3], %3 {strides = array<i32>} : memref<3x16x128xf32, #tpu.memory_space<vmem>>, vector<1x16x128xf32>,
    %c0_4 = arith.constant 0 : index
    %c0_5 = arith.constant 0 : index
    %4 = vector.load %arg1[%c0_4, %c0_5] : memref<16x128xf32, #tpu.memory_space<vmem>>, vector<16x128xf32>
    %5 = tpu.iota {dimensions = array<i32: 0>} : vector<16x128xi32>
    %c15_i32 = arith.constant 15 : i32
    %6 = tpu.dynamic_rotate %4 by %c15_i32 dim 0 : vector<16x128xf32>, i32 -> vector<16x128xf32>
    %c15_i32_6 = arith.constant 15 : i32
    %7 = vector.broadcast %c15_i32_6 : i32 to vector<16x128xi32>
    %8 = arith.cmpi sge, %5, %7 : vector<16x128xi32>
    %9 = vector.extract_strided_slice %4 {offsets = [15, 0], sizes = [1, 128], strides = [1, 1]} : vector<16x128xf32> to vector<1x128xf32>
    %10 = vector.shape_cast %9 : vector<1x128xf32> to vector<1x128xf32>
    %11 = vector.broadcast %10 : vector<1x128xf32> to vector<16x128xf32>
    %12 = arith.select %8, %11, %6 : vector<16x128xi1>, vector<16x128xf32>
    %c1_i32 = arith.constant 1 : i32
    %13 = tpu.dynamic_rotate %4 by %c1_i32 dim 0 : vector<16x128xf32>, i32 -> vector<16x128xf32>
    %c1_i32_7 = arith.constant 1 : i32
    %14 = vector.broadcast %c1_i32_7 : i32 to vector<16x128xi32>
    %15 = arith.cmpi slt, %5, %14 : vector<16x128xi32>
    %16 = vector.extract_strided_slice %4 {offsets = [0, 0], sizes = [1, 128], strides = [1, 1]} : vector<16x128xf32> to vector<1x128xf32>
    %17 = vector.shape_cast %16 : vector<1x128xf32> to vector<1x128xf32>
    %18 = vector.broadcast %17 : vector<1x128xf32> to vector<16x128xf32>
    %19 = arith.select %15, %18, %13 : vector<16x128xi1>, vector<16x128xf32>
    %20 = arith.subf %12, %19 : vector<16x128xf32>
    %cst = arith.constant 1.000000e-01 : f32
    %21 = vector.broadcast %cst : f32 to vector<16x128xf32>
    %22 = arith.mulf %21, %20 : vector<16x128xf32>
    %c14_i32 = arith.constant 14 : i32
    %23 = tpu.dynamic_rotate %4 by %c14_i32 dim 0 : vector<16x128xf32>, i32 -> vector<16x128xf32>
    %c14_i32_8 = arith.constant 14 : i32
    %24 = vector.broadcast %c14_i32_8 : i32 to vector<16x128xi32>
    %25 = arith.cmpi sge, %5, %24 : vector<16x128xi32>
    %26 = vector.extract_strided_slice %4 {offsets = [15, 0], sizes = [1, 128], strides = [1, 1]} : vector<16x128xf32> to vector<1x128xf32>
    %27 = vector.shape_cast %26 : vector<1x128xf32> to vector<1x128xf32>
    %28 = vector.broadcast %27 : vector<1x128xf32> to vector<16x128xf32>
    %29 = arith.select %25, %28, %23 : vector<16x128xi1>, vector<16x128xf32>
    %c2_i32 = arith.constant 2 : i32
    %30 = tpu.dynamic_rotate %4 by %c2_i32 dim 0 : vector<16x128xf32>, i32 -> vector<16x128xf32>
    %c2_i32_9 = arith.constant 2 : i32
    %31 = vector.broadcast %c2_i32_9 : i32 to vector<16x128xi32>
    %32 = arith.cmpi slt, %5, %31 : vector<16x128xi32>
    %33 = vector.extract_strided_slice %4 {offsets = [0, 0], sizes = [1, 128], strides = [1, 1]} : vector<16x128xf32> to vector<1x128xf32>
    %34 = vector.shape_cast %33 : vector<1x128xf32> to vector<1x128xf32>
    %35 = vector.broadcast %34 : vector<1x128xf32> to vector<16x128xf32>
    %36 = arith.select %32, %35, %30 : vector<16x128xi1>, vector<16x128xf32>
    %37 = arith.subf %29, %36 : vector<16x128xf32>
    %cst_10 = arith.constant 2.000000e-01 : f32
    %38 = vector.broadcast %cst_10 : f32 to vector<16x128xf32>
    %39 = arith.mulf %38, %37 : vector<16x128xf32>
    %40 = arith.addf %22, %39 : vector<16x128xf32>
    %c1 = arith.constant 1 : index
    %c0_11 = arith.constant 0 : index
    %c0_12 = arith.constant 0 : index
    %41 = vector.load %arg2[%c1, %c0_11, %c0_12] : memref<3x16x128xf32, #tpu.memory_space<vmem>>, vector<1x16x128xf32>
    %42 = vector.shape_cast %41 : vector<1x16x128xf32> to vector<16x128xf32>
    %43 = vector.shape_cast %40 : vector<16x128xf32> to vector<1x16x128xf32>
    tpu.vector_store %arg2[%c1, %c0_11, %c0_12], %43 {strides = array<i32>} : memref<3x16x128xf32, #tpu.memory_space<vmem>>, vector<1x16x128xf32>,
    %c15_i32_13 = arith.constant 15 : i32
    %44 = tpu.dynamic_rotate %40 by %c15_i32_13 dim 0 : vector<16x128xf32>, i32 -> vector<16x128xf32>
    %c15_i32_14 = arith.constant 15 : i32
    %45 = vector.broadcast %c15_i32_14 : i32 to vector<16x128xi32>
    %46 = arith.cmpi sge, %5, %45 : vector<16x128xi32>
    %47 = vector.extract_strided_slice %40 {offsets = [15, 0], sizes = [1, 128], strides = [1, 1]} : vector<16x128xf32> to vector<1x128xf32>
    %48 = vector.shape_cast %47 : vector<1x128xf32> to vector<1x128xf32>
    %49 = vector.broadcast %48 : vector<1x128xf32> to vector<16x128xf32>
    %50 = arith.select %46, %49, %44 : vector<16x128xi1>, vector<16x128xf32>
    %c1_i32_15 = arith.constant 1 : i32
    %51 = tpu.dynamic_rotate %40 by %c1_i32_15 dim 0 : vector<16x128xf32>, i32 -> vector<16x128xf32>
    %c1_i32_16 = arith.constant 1 : i32
    %52 = vector.broadcast %c1_i32_16 : i32 to vector<16x128xi32>
    %53 = arith.cmpi slt, %5, %52 : vector<16x128xi32>
    %54 = vector.extract_strided_slice %40 {offsets = [0, 0], sizes = [1, 128], strides = [1, 1]} : vector<16x128xf32> to vector<1x128xf32>
    %55 = vector.shape_cast %54 : vector<1x128xf32> to vector<1x128xf32>
    %56 = vector.broadcast %55 : vector<1x128xf32> to vector<16x128xf32>
    %57 = arith.select %53, %56, %51 : vector<16x128xi1>, vector<16x128xf32>
    %58 = arith.subf %50, %57 : vector<16x128xf32>
    %cst_17 = arith.constant 1.000000e-01 : f32
    %59 = vector.broadcast %cst_17 : f32 to vector<16x128xf32>
    %60 = arith.mulf %59, %58 : vector<16x128xf32>
    %c14_i32_18 = arith.constant 14 : i32
    %61 = tpu.dynamic_rotate %40 by %c14_i32_18 dim 0 : vector<16x128xf32>, i32 -> vector<16x128xf32>
    %c14_i32_19 = arith.constant 14 : i32
    %62 = vector.broadcast %c14_i32_19 : i32 to vector<16x128xi32>
    %63 = arith.cmpi sge, %5, %62 : vector<16x128xi32>
    %64 = vector.extract_strided_slice %40 {offsets = [15, 0], sizes = [1, 128], strides = [1, 1]} : vector<16x128xf32> to vector<1x128xf32>
    %65 = vector.shape_cast %64 : vector<1x128xf32> to vector<1x128xf32>
    %66 = vector.broadcast %65 : vector<1x128xf32> to vector<16x128xf32>
    %67 = arith.select %63, %66, %61 : vector<16x128xi1>, vector<16x128xf32>
    %c2_i32_20 = arith.constant 2 : i32
    %68 = tpu.dynamic_rotate %40 by %c2_i32_20 dim 0 : vector<16x128xf32>, i32 -> vector<16x128xf32>
    %c2_i32_21 = arith.constant 2 : i32
    %69 = vector.broadcast %c2_i32_21 : i32 to vector<16x128xi32>
    %70 = arith.cmpi slt, %5, %69 : vector<16x128xi32>
    %71 = vector.extract_strided_slice %40 {offsets = [0, 0], sizes = [1, 128], strides = [1, 1]} : vector<16x128xf32> to vector<1x128xf32>
    %72 = vector.shape_cast %71 : vector<1x128xf32> to vector<1x128xf32>
    %73 = vector.broadcast %72 : vector<1x128xf32> to vector<16x128xf32>
    %74 = arith.select %70, %73, %68 : vector<16x128xi1>, vector<16x128xf32>
    %75 = arith.subf %67, %74 : vector<16x128xf32>
    %cst_22 = arith.constant 2.000000e-01 : f32
    %76 = vector.broadcast %cst_22 : f32 to vector<16x128xf32>
    %77 = arith.mulf %76, %75 : vector<16x128xf32>
    %78 = arith.addf %60, %77 : vector<16x128xf32>
    %c2 = arith.constant 2 : index
    %c0_23 = arith.constant 0 : index
    %c0_24 = arith.constant 0 : index
    %79 = vector.load %arg2[%c2, %c0_23, %c0_24] : memref<3x16x128xf32, #tpu.memory_space<vmem>>, vector<1x16x128xf32>
    %80 = vector.shape_cast %79 : vector<1x16x128xf32> to vector<16x128xf32>
    %81 = vector.shape_cast %78 : vector<16x128xf32> to vector<1x16x128xf32>
    tpu.vector_store %arg2[%c2, %c0_23, %c0_24], %81 {strides = array<i32>} : memref<3x16x128xf32, #tpu.memory_space<vmem>>, vector<1x16x128xf32>,
    return
  }
  func.func @transform_0(%arg0: i32) -> (i32, i32) {
    %c0_i32 = arith.constant 0 : i32
    %c0_i32_0 = arith.constant 0 : i32
    return %c0_i32, %arg0 : i32, i32
  }
  func.func @transform_1(%arg0: i32) -> (i32, i32, i32) {
    %c0_i32 = arith.constant 0 : i32
    %c0_i32_0 = arith.constant 0 : i32
    %c0_i32_1 = arith.constant 0 : i32
    return %c0_i32, %c0_i32_0, %arg0 : i32, i32, i32
  }
}

</mosaic_0001>

<llo_original>
// kernel: tpu_custom_call.1
$region0: #{tpu_custom_call.1}
  #allocation0 [shape = 'u32[]', space=smem, size = 0x4, offset = 0x4, fixed_abs, tag = 'smem constant byte address 0x4 - core index']
  #allocation1 [shape = 'u32[144,128]{1,0:T(1,128)}', space=vmem, size = 0x12000, scoped, tag = 'internal scratch']
  %s0 = inlined_call_operand.hbm [shape: f32[16,128], index: 0, kind: input, shape index: {}]
  %s1 = inlined_call_operand.hbm [shape: f32[3,16,128], index: 1, kind: output, shape index: {}]
  %s2 = sld [smem:[#allocation0]]
  $region18: #{tpu_custom_call.1} parent=0
    _
  %s4 = ssub.s32 1, %s2
  %s5 = scalar_select 0, %s4, %s2
  $region1: #{tpu_custom_call.1} parent=0
    #allocation2 [shape = 'u8[8192]{0}', space=vmem, size = 0x2000, scoped, tag = 'input window, operand 0, single buffered']
    #allocation3 [shape = 's32[1]{0}', space=sflag, size = 0x4, scoped, tag = 'scoped memory for tpu_custom_call.1']
    #allocation4 [shape = 's32[1]{0}', space=sflag, size = 0x4, scoped, tag = 'scoped memory for tpu_custom_call.1']
    #allocation5 [shape = 'u8[24576]{0}', space=vmem, size = 0x6000, scoped, tag = 'output window, operand 0, single buffered']
    %6 = vsyncpa [#allocation3], 0
    %7 = vsyncpa [#allocation4], 0
    // Predicated region
    $region2: #{tpu_custom_call.1} parent=1 // pred_check
      _
    $region3: #{tpu_custom_call.1} parent=1 // pred_check_branch
      %9 = sbr.rel (0) target = $region5
    $region4: #{tpu_custom_call.1} parent=1 // pred_region
      %s11 = ssub.s32 256, 256
      %12 = vsyncadd [#allocation3], %s11
      %s13 = sshll.u32 [#allocation2], 4
      %s14 = int_to_ptr.vmem [resolvable:$true] %s13
      %19 = dma.hbm_to_vmem [thread:$0]  %s0, 256, %s14, [#allocation3], 128, 128, 8
    $region5: #{tpu_custom_call.1} parent=1 // pred_fallthru
      _
    // Predicated region
    $region6: #{tpu_custom_call.1} parent=1 // pred_check
      _
    $region7: #{tpu_custom_call.1} parent=1 // pred_check_branch
      %21 = sbr.rel (0) target = $region9
    $region8: #{tpu_custom_call.1} parent=1 // pred_region
      %22 = dma.done [#allocation3], 256
    $region9: #{tpu_custom_call.1} parent=1 // pred_fallthru
      _
    %v23 = vld [vmem:[#allocation2] sm:$0xff]
    %v24 = vld [vmem:[#allocation2 + $0x8] sm:$0xff]
    %25 = vst [vmem:[#allocation5] sm:$0xff] %v23
    %26 = vst [vmem:[#allocation5 + $0x8] sm:$0xff] %v24
    %v27 = vld [vmem:[#allocation2] sm:$0xff]
    %v28 = vld [vmem:[#allocation2 + $0x8] sm:$0xff]
    %v29 = vlaneseq
    %v30 = vshrl.u32 %v29, 7
    %v31 = vadd.s32 %v30, 8
    %v32 = vrot.slane %v27, 1
    %v33 = vrot.slane %v28, 1
    %vm34 = vcmp.lt.s32.totalorder %v30, 7
    %v35 = vsel %vm34, %v32, %v33
    %v36 = vsel %vm34, %v33, %v32
    %vm37 = vcmp.ge.s32.totalorder %v30, 15
    %vm38 = vcmp.ge.s32.totalorder %v31, 15
    %v39 = vlaneseq
    %v40 = vshrl.u32 %v39, 7
    %v41 = vsub.s32 7, %v40
    %v42 = vrot.slane %v28, %v41
    %v43 = vsel %vm37, %v42, %v35
    %v44 = vsel %vm38, %v42, %v36
    %v45 = vrot.slane %v27, 7
    %v46 = vrot.slane %v28, 7
    %vm47 = vcmp.lt.s32.totalorder %v30, 1
    %v48 = vsel %vm47, %v45, %v46
    %v49 = vsel %vm47, %v46, %v45
    %vm50 = vcmp.lt.s32.totalorder %v31, 1
    %v51 = vlaneseq
    %v52 = vshrl.u32 %v51, 7
    %v53 = vsub.s32 0, %v52
    %v54 = vrot.slane %v27, %v53
    %v55 = vsel %vm47, %v54, %v49
    %v56 = vsel %vm50, %v54, %v48
    %v57 = vsub.f32 %v43, %v55
    %v58 = vsub.f32 %v44, %v56
    %v59 = vmul.f32 %v57, 0.1
    %v60 = vmul.f32 %v58, 0.1
    %v61 = vrot.slane %v27, 2
    %v62 = vrot.slane %v28, 2
    %vm63 = vcmp.lt.s32.totalorder %v30, 6
    %v64 = vsel %vm63, %v61, %v62
    %v65 = vsel %vm63, %v62, %v61
    %vm66 = vcmp.ge.s32.totalorder %v30, 14
    %vm67 = vcmp.ge.s32.totalorder %v31, 14
    %v68 = vsel %vm66, %v42, %v64
    %v69 = vsel %vm67, %v42, %v65
    %v70 = vrot.slane %v27, 6
    %v71 = vrot.slane %v28, 6
    %vm72 = vcmp.lt.s32.totalorder %v30, 2
    %v73 = vsel %vm72, %v70, %v71
    %v74 = vsel %vm72, %v71, %v70
    %vm75 = vcmp.lt.s32.totalorder %v31, 2
    %v76 = vsel %vm72, %v54, %v74
    %v77 = vsel %vm75, %v54, %v73
    %v78 = vsub.f32 %v68, %v76
    %v79 = vsub.f32 %v69, %v77
    %v80 = vmul.f32 %v78, 0.2
    %v81 = vmul.f32 %v79, 0.2
    %v82 = vadd.f32 %v59, %v80
    %v83 = vadd.f32 %v60, %v81
    %s84 = scalar_lea.vmem [#allocation5], 16
    %85 = vst [vmem:[%s84] sm:$0xff] %v82
    %86 = vst [vmem:[%s84 + $0x8] sm:$0xff] %v83
    %v87 = vrot.slane %v82, 1
    %v88 = vrot.slane %v83, 1
    %v89 = vsel %vm34, %v87, %v88
    %v90 = vsel %vm34, %v88, %v87
    %v91 = vlaneseq
    %v92 = vshrl.u32 %v91, 7
    %v93 = vsub.s32 7, %v92
    %v94 = vrot.slane %v83, %v93
    %v95 = vsel %vm37, %v94, %v89
    %v96 = vsel %vm38, %v94, %v90
    %v97 = vrot.slane %v82, 7
    %v98 = vrot.slane %v83, 7
    %v99 = vsel %vm47, %v97, %v98
    %v100 = vsel %vm47, %v98, %v97
    %v101 = vlaneseq
    %v102 = vshrl.u32 %v101, 7
    %v103 = vsub.s32 0, %v102
    %v104 = vrot.slane %v82, %v103
    %v105 = vsel %vm47, %v104, %v100
    %v106 = vsel %vm50, %v104, %v99
    %v107 = vsub.f32 %v95, %v105
    %v108 = vsub.f32 %v96, %v106
    %v109 = vmul.f32 %v107, 0.1
    %v110 = vmul.f32 %v108, 0.1
    %v111 = vrot.slane %v82, 2
    %v112 = vrot.slane %v83, 2
    %v113 = vsel %vm63, %v111, %v112
    %v114 = vsel %vm63, %v112, %v111
    %v115 = vsel %vm66, %v94, %v113
    %v116 = vsel %vm67, %v94, %v114
    %v117 = vrot.slane %v82, 6
    %v118 = vrot.slane %v83, 6
    %v119 = vsel %vm72, %v117, %v118
    %v120 = vsel %vm72, %v118, %v117
    %v121 = vsel %vm72, %v104, %v120
    %v122 = vsel %vm75, %v104, %v119
    %v123 = vsub.f32 %v115, %v121
    %v124 = vsub.f32 %v116, %v122
    %v125 = vmul.f32 %v123, 0.2
    %v126 = vmul.f32 %v124, 0.2
    %v127 = vadd.f32 %v109, %v125
    %v128 = vadd.f32 %v110, %v126
    %s129 = scalar_lea.vmem [#allocation5], 32
    %130 = vst [vmem:[%s129] sm:$0xff] %v127
    %131 = vst [vmem:[%s129 + $0x8] sm:$0xff] %v128
    // Predicated region
    $region10: #{tpu_custom_call.1} parent=1 // pred_check
      _
    $region11: #{tpu_custom_call.1} parent=1 // pred_check_branch
      %133 = sbr.rel (0) target = $region13
    $region12: #{tpu_custom_call.1} parent=1 // pred_region
      %s135 = ssub.s32 768, 768
      %136 = vsyncadd [#allocation4], %s135
      %s137 = sshll.u32 [#allocation5], 4
      %s138 = int_to_ptr.vmem [resolvable:$true] %s137
      %143 = dma.vmem_to_hbm [thread:$0]  %s138, 768, %s1, [#allocation4], 128, 128, 8
    $region13: #{tpu_custom_call.1} parent=1 // pred_fallthru
      _
    // Predicated region
    $region14: #{tpu_custom_call.1} parent=1 // pred_check
      _
    $region15: #{tpu_custom_call.1} parent=1 // pred_check_branch
      %145 = sbr.rel (0) target = $region17
    $region16: #{tpu_custom_call.1} parent=1 // pred_region
      %146 = dma.done [#allocation4], 768
    $region17: #{tpu_custom_call.1} parent=1 // pred_fallthru
      _
    %147 = vsyncpa [#allocation3], 1
    %148 = vsyncpa [#allocation4], 1

</llo_original>
